<compile_context>
chip_gen: v7x
topology: tpu7x:2x2x1
jax: 0.10.0
libtpu: 0.0.40
codegen_flags: <defaults>
</compile_context>

<pallas_src>
import jax
import jax.numpy as jnp
from jax import lax
from jax.experimental import pallas as pl
from jax.experimental.pallas import tpu as pltpu


def _pick_tile(n, preferred):
    """Largest tile <= preferred that divides n (falls back to n)."""
    for t in (preferred, 1024, 512, 256, 128, 64, 32, 16, 8):
        if 0 < t <= n and n % t == 0:
            return t
    return n


# -----------------------------------------------------------------------------
# Kernel 1: per-row-tile negative squared pairwise distance (torch `knn` dists)
# -----------------------------------------------------------------------------
def _pdist_kernel(rows_ref, full_ref, xxr_ref, out_ref):
    rows = rows_ref[...]                                             # (TN, Dh)
    full = full_ref[...]                                             # (N,  Dh)
    inner = lax.dot_general(rows, full, (((1,), (1,)), ((), ())),
                            preferred_element_type=jnp.float32)      # (TN, N) = R F^T
    xx_col = jnp.sum(rows * rows, axis=1, keepdims=True)             # (TN, 1)  XLU reduce
    out_ref[...] = 2.0 * inner - xx_col - xxr_ref[...]               # -(|r|^2 - 2 r.f + |f|^2)


def pairwise_neg_sqdist(pos_bnd, *, tn=None):
    B, N, Dh = pos_bnd.shape
    if tn is None:
        tn = _pick_tile(N, 512)
    assert N % tn == 0, (N, tn)
    # Tiny O(B*N*Dh) precompute; avoids an in-kernel (N,1)->(1,N) transpose.
    xx_row = jnp.sum(pos_bnd * pos_bnd, axis=-1)[:, None, :]         # (B, 1, N)
    return pl.pallas_call(
        _pdist_kernel,
        out_shape=jax.ShapeDtypeStruct((B, N, N), jnp.float32),
        grid=(B, N // tn),
        in_specs=[
            pl.BlockSpec((None, tn, Dh), lambda b, i: (b, i, 0)),    # row tile
            pl.BlockSpec((None, N, Dh), lambda b, i: (b, 0, 0)),     # full pos, resident over i
            pl.BlockSpec((None, 1, N), lambda b, i: (b, 0, 0)),      # |x|^2 row vector
        ],
        out_specs=pl.BlockSpec((None, tn, N), lambda b, i: (b, i, 0)),
        compiler_params=pltpu.CompilerParams(
            dimension_semantics=("parallel", "parallel")),
    )(pos_bnd, pos_bnd, xx_row)


# -----------------------------------------------------------------------------
# Kernel 2: fused conv1 -> bn1 -> relu -> max_k, implicit concat(x0, x1),
#           conv2 -> bn2 -> relu.  K is a pipelined grid axis; x0/x1 are
#           running-max accumulators in VMEM scratch.
# -----------------------------------------------------------------------------
def _dgcnn_core_kernel(neigh_ref, ctr_ref,
                       w1n_ref, w1c_ref, b1_ref,
                       w2n_ref, w2c_ref, w2x_ref, b2_ref,
                       out_ref,
                       nbr_max_sc, x1_sc, ctr_term_sc):
    kk = pl.program_id(2)
    nbr = neigh_ref[...]                                             # (TN, dims)

    @pl.when(kk == 0)
    def _init():
        # center contribution to conv1 (identical for every neighbor) + bias,
        # computed once per (b, n) tile; also init the running maxes.
        ctr_term_sc[...] = (
            jnp.dot(ctr_ref[...], w1c_ref[...], preferred_element_type=jnp.float32)
            + b1_ref[...])
        nbr_max_sc[...] = nbr
        x1_sc[...] = jnp.zeros_like(x1_sc)                           # relu output >= 0

    @pl.when(kk > 0)
    def _acc_nbr():
        nbr_max_sc[...] = jnp.maximum(nbr_max_sc[...], nbr)

    # conv1 (neighbor half only) + hoisted center term + relu; bn1 scale is
    # pre-folded into the weights, bn1 bias is already inside ctr_term.
    hk = jnp.maximum(
        jnp.dot(nbr, w1n_ref[...], preferred_element_type=jnp.float32)
        + ctr_term_sc[...], 0.0)
    x1_sc[...] = jnp.maximum(x1_sc[...], hk)

    @pl.when(kk == pl.num_programs(2) - 1)
    def _finalize():
        w2x = w2x_ref[...]
        # conv2 over the implicit concat [max_k nbr | ctr | x1]  (split matmuls,
        # no (TN, 3*D) concat materialized), bn2 scale pre-folded, + bias, relu.
        o = (jnp.dot(nbr_max_sc[...], w2n_ref[...], preferred_element_type=jnp.float32)
             + jnp.dot(ctr_ref[...], w2c_ref[...], preferred_element_type=jnp.float32)
             + jnp.dot(x1_sc[...].astype(w2x.dtype), w2x,
                       preferred_element_type=jnp.float32)
             + b2_ref[...])
        out_ref[...] = jnp.maximum(o, 0.0)


def dgcnn_core(neigh_bknd, ctr_bnd, kp, *, tn=None):
    B, K, N, dims = neigh_bknd.shape
    D = kp["w1n"].shape[1]
    if tn is None:
        # Bigger row tiles -> larger MXU ops / fewer grid steps; ~12 MiB resident
        # VMEM at (emb_dims=512, N=1024, K=15, bf16) with double buffering.
        tn = _pick_tile(N, 512)
    assert N % tn == 0, (N, tn)
    return pl.pallas_call(
        _dgcnn_core_kernel,
        out_shape=jax.ShapeDtypeStruct((B, N, D), jnp.float32),
        grid=(B, N // tn, K),
        in_specs=[
            pl.BlockSpec((None, None, tn, dims), lambda b, n, k: (b, k, n, 0)),  # neighbor slab
            pl.BlockSpec((None, tn, dims), lambda b, n, k: (b, n, 0)),           # center (resident over k)
            pl.BlockSpec((dims, D), lambda b, n, k: (0, 0)),                     # w1 (neighbor half)
            pl.BlockSpec((dims, D), lambda b, n, k: (0, 0)),                     # w1 (center half)
            pl.BlockSpec((1, D), lambda b, n, k: (0, 0)),                        # bn1 bias
            pl.BlockSpec((dims, D), lambda b, n, k: (0, 0)),                     # w2 (neighbor-max half)
            pl.BlockSpec((dims, D), lambda b, n, k: (0, 0)),                     # w2 (center half)
            pl.BlockSpec((D, D), lambda b, n, k: (0, 0)),                        # w2 (x1 block)
            pl.BlockSpec((1, D), lambda b, n, k: (0, 0)),                        # bn2 bias
        ],
        out_specs=pl.BlockSpec((None, tn, D), lambda b, n, k: (b, n, 0)),
        scratch_shapes=[
            pltpu.VMEM((tn, dims), neigh_bknd.dtype),   # running max of neighbor features
            pltpu.VMEM((tn, D), jnp.float32),           # running max of relu(bn1(conv1)))
            pltpu.VMEM((tn, D), jnp.float32),           # hoisted center conv1 term + bias
        ],
        compiler_params=pltpu.CompilerParams(
            dimension_semantics=("parallel", "parallel", "arbitrary")),
    )(neigh_bknd, ctr_bnd,
      kp["w1n"], kp["w1c"], kp["b1"],
      kp["w2n"], kp["w2c"], kp["w2x"], kp["b2"])


# -----------------------------------------------------------------------------
# Parameters (deterministic, synthetic).  BatchNorm in eval mode.
# -----------------------------------------------------------------------------
def init_params(key, emb_dims):
    D = emb_dims
    ks = jax.random.split(key, 10)
    w1 = jax.random.normal(ks[0], (D, 2 * D), jnp.float32) * (1.0 / jnp.sqrt(2.0 * D))
    w2 = jax.random.normal(ks[1], (D, 3 * D), jnp.float32) * (1.0 / jnp.sqrt(3.0 * D))
    eps = 1e-5
    g1 = jax.random.uniform(ks[2], (D,), jnp.float32, 0.5, 1.5)
    be1 = 0.1 * jax.random.normal(ks[3], (D,), jnp.float32)
    m1 = 0.1 * jax.random.normal(ks[4], (D,), jnp.float32)
    v1 = jax.random.uniform(ks[5], (D,), jnp.float32, 0.5, 1.5)
    g2 = jax.random.uniform(ks[6], (D,), jnp.float32, 0.5, 1.5)
    be2 = 0.1 * jax.random.normal(ks[7], (D,), jnp.float32)
    m2 = 0.1 * jax.random.normal(ks[8], (D,), jnp.float32)
    v2 = jax.random.uniform(ks[9], (D,), jnp.float32, 0.5, 1.5)
    s1 = g1 / jnp.sqrt(v1 + eps)
    b1 = be1 - m1 * s1
    s2 = g2 / jnp.sqrt(v2 + eps)
    b2 = be2 - m2 * s2
    return {"w1": w1, "w2": w2, "s1": s1, "b1": b1, "s2": s2, "b2": b2}


def prepare_kernel_params(p, compute_dtype=jnp.bfloat16):
    """Fold BN scales into the weights, split/reorder them for the fused kernel."""
    D = p["w1"].shape[0]
    dims = D
    Dh = dims // 2
    w1t = (p["w1"] * p["s1"][:, None]).T          # (2*dims, D), bn1 scale folded in
    w2t = (p["w2"] * p["s2"][:, None]).T          # (3*dims, D), bn2 scale folded in
    # conv1/conv2 input-channel order is [nbr_pt | ctr_pt | nbr_pos | ctr_pos (| x1)];
    # regroup rows so the neighbor tensor ([pt | pos]) multiplies one contiguous weight.
    w1n = jnp.concatenate([w1t[0:Dh], w1t[dims:dims + Dh]], axis=0)          # (dims, D)
    w1c = jnp.concatenate([w1t[Dh:dims], w1t[dims + Dh:2 * dims]], axis=0)   # (dims, D)
    w2n = jnp.concatenate([w2t[0:Dh], w2t[dims:dims + Dh]], axis=0)          # (dims, D)
    w2c = jnp.concatenate([w2t[Dh:dims], w2t[dims + Dh:2 * dims]], axis=0)   # (dims, D)
    w2x = w2t[2 * dims:]                                                      # (D, D)
    cast = lambda a: a.astype(compute_dtype)
    return {
        "w1n": cast(w1n), "w1c": cast(w1c), "b1": p["b1"][None, :].astype(jnp.float32),
        "w2n": cast(w2n), "w2c": cast(w2c), "w2x": cast(w2x),
        "b2": p["b2"][None, :].astype(jnp.float32),
    }


# -----------------------------------------------------------------------------
# Pallas-backed forward (equivalent of DGCNN_func.forward, BatchNorm in eval mode)
# -----------------------------------------------------------------------------
def dgcnn_func_forward(kparams, t, x_input, *, compute_dtype=jnp.bfloat16, tn=None):
    del t  # `t` is unused in the PyTorch forward as well
    B, dims, N = x_input.shape
    Dh = dims // 2
    k = min(N, 16) - 1

    xT = jnp.swapaxes(x_input, 1, 2).astype(jnp.float32)             # [B, N, dims]
    pos = xT[:, :, Dh:]                                              # [B, N, Dh] (f32 kNN)

    pdist = pairwise_neg_sqdist(pos)                                 # [B, N, N]
    idx = lax.top_k(pdist, k + 1)[1][:, :, 1:]                       # [B, N, k] (drop self)

    # TODO(synk): top_k + the data-dependent neighbor gather stay in JAX glue; an
    # in-kernel gather (resident per-batch point set + SMEM indices) would avoid
    # materializing the K-expanded neighbor tensor in HBM, but Mosaic's dynamic
    # row-gather support is too shape-restricted to rely on here.
    idx_kn = jnp.swapaxes(idx, 1, 2)                                 # [B, k, N]
    x_cd = xT.astype(compute_dtype)                                  # matmul-input dtype
    neigh = jax.vmap(lambda xt_, i_: xt_[i_])(x_cd, idx_kn)          # [B, k, N, dims]

    out_nd = dgcnn_core(neigh, x_cd, kparams, tn=tn)                 # [B, N, D]
    return jnp.swapaxes(out_nd, 1, 2)                                # [B, D, N]


# -----------------------------------------------------------------------------
# Pure-JAX literal transcription of the PyTorch (NCHW) forward, used as a check.
# -----------------------------------------------------------------------------
def reference_forward(params, t, x_input):
    del t
    B, dims, N = x_input.shape
    Dh = dims // 2
    D = params["w1"].shape[0]
    k = min(N, 16) - 1
    hp = lax.Precision.HIGHEST

    xpos = x_input[:, Dh:, :]                                        # [B, Dh, N]
    inner = -2.0 * jnp.einsum('bdn,bdm->bnm', xpos, xpos, precision=hp)
    xx = jnp.sum(xpos ** 2, axis=1, keepdims=True)                   # [B, 1, N]
    pdist = -xx - inner - jnp.swapaxes(xx, 1, 2)                     # [B, N, N]
    idx = lax.top_k(pdist, k + 1)[1][:, :, 1:]                       # [B, N, k]

    xT = jnp.swapaxes(x_input, 1, 2)                                 # [B, N, dims]
    feature = jax.vmap(lambda xt, i: xt[i])(xT, idx)                 # [B, N, k, dims]
    xc = jnp.broadcast_to(xT[:, :, None, :], feature.shape)
    f_point = jnp.concatenate([feature[..., :Dh], xc[..., :Dh]], axis=3).transpose(0, 3, 1, 2)
    f_pos = jnp.concatenate([feature[..., Dh:], xc[..., Dh:]], axis=3).transpose(0, 3, 1, 2)
    graph = jnp.concatenate([f_point, f_pos], axis=1)                # [B, 2*dims, N, k]

    s1 = params["s1"].reshape(1, D, 1, 1); b1 = params["b1"].reshape(1, D, 1, 1)
    s2 = params["s2"].reshape(1, D, 1, 1); b2 = params["b2"].reshape(1, D, 1, 1)

    x0 = jnp.max(graph, axis=-1, keepdims=True)                      # [B, 2*dims, N, 1]
    h = jnp.einsum('oi,binj->bonj', params["w1"], graph, precision=hp)
    h = jnp.maximum(h * s1 + b1, 0.0)
    x1 = jnp.max(h, axis=-1, keepdims=True)                          # [B, D, N, 1]
    xcat = jnp.concatenate([x0, x1], axis=1)                         # [B, 3*D, N, 1]
    o = jnp.einsum('oi,binj->bonj', params["w2"], xcat, precision=hp)
    o = jnp.maximum(o * s2 + b2, 0.0)
    return o.reshape(B, -1, N)


if __name__ == "__main__":
    key = jax.random.PRNGKey(0)
    emb_dims = 32          # small stand-in for the default 512 (num_dims must equal emb_dims)
    B, N = 2, 16
    kp_key, kx_key = jax.random.split(key, 2)

    raw = init_params(kp_key, emb_dims)
    x_input = jax.random.normal(kx_key, (B, emb_dims, N), jnp.float32)
    t = jnp.zeros((B,), jnp.float32)   # unused by the forward pass

    ref = jax.block_until_ready(reference_forward(raw, t, x_input))

    # f32 path: tight numerical check against the HIGHEST-precision reference.
    kp32 = prepare_kernel_params(raw, jnp.float32)
    out32 = jax.block_until_ready(
        dgcnn_func_forward(kp32, t, x_input, compute_dtype=jnp.float32))
    assert out32.shape == (B, emb_dims, N), out32.shape
    if not bool(jnp.allclose(out32, ref, atol=1e-3, rtol=1e-3)):
        raise AssertionError(
            f"f32 mismatch vs reference: max abs err = {float(jnp.max(jnp.abs(out32 - ref)))}")

    # bf16 path: production (MXU-rate) configuration; loose check (bf16 inputs, f32 accum).
    kp16 = prepare_kernel_params(raw, jnp.bfloat16)
    out16 = jax.block_until_ready(
        dgcnn_func_forward(kp16, t, x_input, compute_dtype=jnp.bfloat16))
    assert out16.shape == (B, emb_dims, N), out16.shape
    if not bool(jnp.allclose(out16, ref, atol=2.5e-1, rtol=1e-1)):
        raise AssertionError(
            f"bf16 mismatch vs reference: max abs err = {float(jnp.max(jnp.abs(out16 - ref)))}")

    print("KERNEL_OK")
</pallas_src>

<mosaic_0001>
module attributes {stable_mosaic.version = 11 : i64} {
  func.func @_pdist_kernel(%arg0: i32, %arg1: i32, %arg2: memref<1x16x16xf32, #tpu.memory_space<vmem>>, %arg3: memref<1x16x16xf32, #tpu.memory_space<vmem>>, %arg4: memref<1x1x16xf32, #tpu.memory_space<vmem>>, %arg5: memref<1x16x16xf32, #tpu.memory_space<vmem>>) attributes {dimension_semantics = [#tpu.dimension_semantics<parallel>, #tpu.dimension_semantics<parallel>], iteration_bounds = array<i64: 2, 1>, scalar_prefetch = 0 : i64, scratch_operands = 0 : i64, tpu.core_type = #tpu.core_type<tc>, window_params = [{transform_indices = @transform_0, window_bounds = array<i64: 1, 16, 16>}, {transform_indices = @transform_1, window_bounds = array<i64: 1, 16, 16>}, {transform_indices = @transform_2, window_bounds = array<i64: 1, 1, 16>}, {transform_indices = @transform_3, window_bounds = array<i64: 1, 16, 16>}]} {
    %c0 = arith.constant 0 : index
    %c0_0 = arith.constant 0 : index
    %c0_1 = arith.constant 0 : index
    %0 = vector.load %arg2[%c0, %c0_0, %c0_1] : memref<1x16x16xf32, #tpu.memory_space<vmem>>, vector<1x16x16xf32>
    %1 = vector.shape_cast %0 : vector<1x16x16xf32> to vector<16x16xf32>
    %c0_2 = arith.constant 0 : index
    %c0_3 = arith.constant 0 : index
    %c0_4 = arith.constant 0 : index
    %2 = vector.load %arg3[%c0_2, %c0_3, %c0_4] : memref<1x16x16xf32, #tpu.memory_space<vmem>>, vector<1x16x16xf32>
    %3 = vector.shape_cast %2 : vector<1x16x16xf32> to vector<16x16xf32>
    %cst = arith.constant dense<0.000000e+00> : vector<16x16xf32>
    %4 = tpu.matmul %1, %3, %cst {dimension_numbers = #tpu.dot_dimension_numbers<[1], [1], [0], [0], [0, 0, 1, 0], [], []>} : vector<16x16xf32>, vector<16x16xf32>, vector<16x16xf32> -> vector<16x16xf32>
    %5 = arith.mulf %1, %1 : vector<16x16xf32>
    %cst_5 = arith.constant dense<0.000000e+00> : vector<16xf32>
    %6 = vector.multi_reduction <add>, %5, %cst_5 [1] : vector<16x16xf32> to vector<16xf32>
    %7 = vector.shape_cast %6 : vector<16xf32> to vector<16x1xf32>
    %cst_6 = arith.constant 2.000000e+00 : f32
    %8 = vector.broadcast %cst_6 : f32 to vector<16x16xf32>
    %9 = arith.mulf %8, %4 : vector<16x16xf32>
    %10 = vector.broadcast %7 : vector<16x1xf32> to vector<16x16xf32>
    %11 = arith.subf %9, %10 : vector<16x16xf32>
    %c0_7 = arith.constant 0 : index
    %c0_8 = arith.constant 0 : index
    %c0_9 = arith.constant 0 : index
    %12 = vector.load %arg4[%c0_7, %c0_8, %c0_9] : memref<1x1x16xf32, #tpu.memory_space<vmem>>, vector<1x1x16xf32>
    %13 = vector.shape_cast %12 : vector<1x1x16xf32> to vector<1x16xf32>
    %14 = vector.broadcast %13 : vector<1x16xf32> to vector<16x16xf32>
    %15 = arith.subf %11, %14 : vector<16x16xf32>
    %c0_10 = arith.constant 0 : index
    %c0_11 = arith.constant 0 : index
    %c0_12 = arith.constant 0 : index
    %16 = vector.load %arg5[%c0_10, %c0_11, %c0_12] : memref<1x16x16xf32, #tpu.memory_space<vmem>>, vector<1x16x16xf32>
    %17 = vector.shape_cast %16 : vector<1x16x16xf32> to vector<16x16xf32>
    %18 = vector.shape_cast %15 : vector<16x16xf32> to vector<1x16x16xf32>
    tpu.vector_store %arg5[%c0_10, %c0_11, %c0_12], %18 {strides = array<i32>} : memref<1x16x16xf32, #tpu.memory_space<vmem>>, vector<1x16x16xf32>,
    return
  }
  func.func @transform_0(%arg0: i32, %arg1: i32) -> (i32, i32, i32) {
    %c0_i32 = arith.constant 0 : i32
    %c0_i32_0 = arith.constant 0 : i32
    return %arg0, %arg1, %c0_i32 : i32, i32, i32
  }
  func.func @transform_1(%arg0: i32, %arg1: i32) -> (i32, i32, i32) {
    %c0_i32 = arith.constant 0 : i32
    %c0_i32_0 = arith.constant 0 : i32
    %c0_i32_1 = arith.constant 0 : i32
    return %arg0, %c0_i32, %c0_i32_0 : i32, i32, i32
  }
  func.func @transform_2(%arg0: i32, %arg1: i32) -> (i32, i32, i32) {
    %c0_i32 = arith.constant 0 : i32
    %c0_i32_0 = arith.constant 0 : i32
    %c0_i32_1 = arith.constant 0 : i32
    return %arg0, %c0_i32, %c0_i32_0 : i32, i32, i32
  }
  func.func @transform_3(%arg0: i32, %arg1: i32) -> (i32, i32, i32) {
    %c0_i32 = arith.constant 0 : i32
    %c0_i32_0 = arith.constant 0 : i32
    return %arg0, %arg1, %c0_i32 : i32, i32, i32
  }
}

</mosaic_0001>

<llo_original>
// kernel: tpu_custom_call.1
$region0: #{tpu_custom_call.1}
  #allocation0 [shape = 'u32[]', space=smem, size = 0x4, offset = 0x4, fixed_abs, tag = 'smem constant byte address 0x4 - core index']
  #allocation1 [shape = 'u32[144,128]{1,0:T(1,128)}', space=vmem, size = 0x12000, scoped, tag = 'internal scratch']
  %s0 = inlined_call_operand.hbm [shape: f32[2,16,16], index: 0, kind: input, shape index: {}]
  %s1 = inlined_call_operand.hbm [shape: f32[2,16,16], index: 1, kind: input, shape index: {}]
  %s2 = inlined_call_operand.vmem [shape: f32[2,1,16], index: 2, kind: input, shape index: {}]
  %s3 = inlined_call_operand.hbm [shape: f32[2,16,16], index: 3, kind: output, shape index: {}]
  %s4 = sld [smem:[#allocation0]]
  $region53: #{tpu_custom_call.1} parent=0
    _
  %s6 = ssub.s32 1, %s4
  %s7 = scalar_select 0, %s6, %s4
  $region1: #{tpu_custom_call.1} parent=0
    #allocation2 [shape = 'u8[16384]{0}', space=vmem, size = 0x4000, scoped, tag = 'input window, operand 0']
    #allocation3 [shape = 's32[2]{0}', space=sflag, size = 0x8, scoped, tag = 'scoped memory for tpu_custom_call.1']
    #allocation4 [shape = 's32[2]{0}', space=sflag, size = 0x8, scoped, tag = 'scoped memory for tpu_custom_call.1']
    #allocation5 [shape = 'u8[16384]{0}', space=vmem, size = 0x4000, scoped, tag = 'input window, operand 1']
    #allocation6 [shape = 's32[2]{0}', space=sflag, size = 0x8, scoped, tag = 'scoped memory for tpu_custom_call.1']
    #allocation7 [shape = 'u8[16384]{0}', space=vmem, size = 0x4000, scoped, tag = 'output window, operand 0']
    %8 = vsyncpa [#allocation3], 0
    %s9 = scalar_lea.sflag [#allocation3], 1
    %10 = vsyncpa %s9, 0
    %11 = vsyncpa [#allocation6], 0
    %s12 = scalar_lea.sflag [#allocation6], 1
    %13 = vsyncpa %s12, 0
    %14 = vsyncpa [#allocation4], 0
    %s15 = scalar_lea.sflag [#allocation4], 1
    %16 = vsyncpa %s15, 0
    loop: start=0, step=1, limit=4
    $region2: #{tpu_custom_call.1} parent=1 // loop_pre_header
      _
    $region3: #{tpu_custom_call.1} parent=1 // loop_header
      %s18 = sphi 0, %s22
      %p19 = scmp.ge.s32.totalorder %s18, 4
      %s25 = sphi 0, %s37
      %s26 = sphi 0, %s33
      %s27 = sphi 0, %s25
      %s28 = sphi 0, %s26
      %s29 = sphi 0, %s27
      %s30 = sphi 0, %s28
      %s42 = sphi 0, %s44
      %s45 = sphi 0, %s42
      %s46 = sphi 0, %s45
      %s62 = sphi 0, %s46
      %s68 = sphi 0, %s70
      %s71 = sphi 0, %s68
      %s72 = sphi 0, %s71
      %s88 = sphi 0, %s72
      %s94 = sphi 0, %s96
      %s97 = sphi 0, %s94
      %s98 = sphi 0, %s97
      %s114 = sphi 0, %s98
      %s122 = sphi 0, %s124
      %s125 = sphi 0, %s122
      %s126 = sphi 0, %s125
      %s142 = sphi 0, %s126
    $region4: #{tpu_custom_call.1} parent=1 // loop_header_branch
      %21 = sbr.rel (%p19) target = $region8
    $region5: #{tpu_custom_call.1} parent=1 // loop_body
      %s23 = ssub.s32 %s18, 1
      %s24 = ssub.s32 %s18, 2
      %s31 = sadd.s32 1, %s26
      %p32 = scmp.ge.s32.totalorder %s31, 1
      %s33 = scalar_select %p32, 0, %s31
      %s34 = sadd.s32 1, %s25
      %s35 = scalar_select %p32, %s34, %s25
      %p36 = scmp.ge.s32.totalorder %s35, 2
      %s37 = scalar_select %p36, 0, %s35
      %s38 = ssub.s32 %s25, %s37
      %s39 = ssub.s32 %s26, %s33
      %s40 = sor.u32 %s38, %s39
      %p41 = scmp.eq.s32.totalorder %s40, 0
      %s43 = sadd.s32 %s42, 1
      %s44 = scalar_select %p41, %s42, %s43
      %p47 = pneg %p41
      %p48 = scmp.eq.s32.totalorder %s18, 1
      %p49 = por %p47, %p48
      %p50 = scmp.ne.s32.totalorder %s42, %s45
      %p51 = scmp.eq.s32.totalorder %s18, 0
      %p52 = por %p50, %p51
      %p53 = scmp.ne.s32.totalorder %s42, %s45
      %p54 = scmp.eq.s32.totalorder %s23, 1
      %p55 = por %p53, %p54
      %p56 = scmp.ne.s32.totalorder %s45, %s46
      %p57 = scmp.eq.s32.totalorder %s23, 0
      %p58 = por %p56, %p57
      %p59 = scmp.ne.s32.totalorder %s45, %s46
      %p60 = scmp.eq.s32.totalorder %s24, 1
      %p61 = por %p59, %p60
      %p63 = scmp.ne.s32.totalorder %s46, %s62
      %p64 = scmp.eq.s32.totalorder %s24, 0
      %p65 = por %p63, %p64
      %s66 = ssub.s32 %s25, %s37
      %p67 = scmp.eq.s32.totalorder %s66, 0
      %s69 = sadd.s32 %s68, 1
      %s70 = scalar_select %p67, %s68, %s69
      %p73 = pneg %p67
      %p74 = scmp.eq.s32.totalorder %s18, 1
      %p75 = por %p73, %p74
      %p76 = scmp.ne.s32.totalorder %s68, %s71
      %p77 = scmp.eq.s32.totalorder %s18, 0
      %p78 = por %p76, %p77
      %p79 = scmp.ne.s32.totalorder %s68, %s71
      %p80 = scmp.eq.s32.totalorder %s23, 1
      %p81 = por %p79, %p80
      %p82 = scmp.ne.s32.totalorder %s71, %s72
      %p83 = scmp.eq.s32.totalorder %s23, 0
      %p84 = por %p82, %p83
      %p85 = scmp.ne.s32.totalorder %s71, %s72
      %p86 = scmp.eq.s32.totalorder %s24, 1
      %p87 = por %p85, %p86
      %p89 = scmp.ne.s32.totalorder %s72, %s88
      %p90 = scmp.eq.s32.totalorder %s24, 0
      %p91 = por %p89, %p90
      %s92 = ssub.s32 %s25, %s37
      %p93 = scmp.eq.s32.totalorder %s92, 0
      %s95 = sadd.s32 %s94, 1
      %s96 = scalar_select %p93, %s94, %s95
      %p99 = pneg %p93
      %p100 = scmp.eq.s32.totalorder %s18, 1
      %p101 = por %p99, %p100
      %p102 = scmp.ne.s32.totalorder %s94, %s97
      %p103 = scmp.eq.s32.totalorder %s18, 0
      %p104 = por %p102, %p103
      %p105 = scmp.ne.s32.totalorder %s94, %s97
      %p106 = scmp.eq.s32.totalorder %s23, 1
      %p107 = por %p105, %p106
      %p108 = scmp.ne.s32.totalorder %s97, %s98
      %p109 = scmp.eq.s32.totalorder %s23, 0
      %p110 = por %p108, %p109
      %p111 = scmp.ne.s32.totalorder %s97, %s98
      %p112 = scmp.eq.s32.totalorder %s24, 1
      %p113 = por %p111, %p112
      %p115 = scmp.ne.s32.totalorder %s98, %s114
      %p116 = scmp.eq.s32.totalorder %s24, 0
      %p117 = por %p115, %p116
      %s118 = ssub.s32 %s25, %s37
      %s119 = ssub.s32 %s26, %s33
      %s120 = sor.u32 %s118, %s119
      %p121 = scmp.eq.s32.totalorder %s120, 0
      %s123 = sadd.s32 %s122, 1
      %s124 = scalar_select %p121, %s122, %s123
      %p127 = pneg %p121
      %p128 = scmp.eq.s32.totalorder %s18, 1
      %p129 = por %p127, %p128
      %p130 = scmp.ne.s32.totalorder %s122, %s125
      %p131 = scmp.eq.s32.totalorder %s18, 0
      %p132 = por %p130, %p131
      %p133 = scmp.ne.s32.totalorder %s122, %s125
      %p134 = scmp.eq.s32.totalorder %s23, 1
      %p135 = por %p133, %p134
      %p136 = scmp.ne.s32.totalorder %s125, %s126
      %p137 = scmp.eq.s32.totalorder %s23, 0
      %p138 = por %p136, %p137
      %p139 = scmp.ne.s32.totalorder %s125, %s126
      %p140 = scmp.eq.s32.totalorder %s24, 1
      %p141 = por %p139, %p140
      %p143 = scmp.ne.s32.totalorder %s126, %s142
      %p144 = scmp.eq.s32.totalorder %s24, 0
      %p145 = por %p143, %p144
      %p146 = scmp.le.s32.totalorder 1, %s18
      %p147 = scmp.lt.s32.totalorder %s18, 3
      %p148 = pnand %p146, %p147
      %p149 = pneg %p148
      // Predicated region
      $region9: #{tpu_custom_call.1} parent=5 // pred_check
        _
      $region10: #{tpu_custom_call.1} parent=5 // pred_check_branch
        %151 = sbr.rel (%p148) target = $region12
      $region11: #{tpu_custom_call.1} parent=5 // pred_region
        %s152 = ssub.s32 %s18, 1
      $region12: #{tpu_custom_call.1} parent=5 // pred_fallthru
        _
      %p153 = scmp.lt.s32.totalorder %s18, 2
      // Predicated region
      $region13: #{tpu_custom_call.1} parent=5 // pred_check
        %p154 = pneg %p153
      $region14: #{tpu_custom_call.1} parent=5 // pred_check_branch
        %156 = sbr.rel (%p154) target = $region16
      $region15: #{tpu_custom_call.1} parent=5 // pred_region
        // Predicated region
        $region17: #{tpu_custom_call.1} parent=15 // pred_check
          %p157 = pneg %p52
        $region18: #{tpu_custom_call.1} parent=15 // pred_check_branch
          %159 = sbr.rel (%p157) target = $region20
        $region19: #{tpu_custom_call.1} parent=15 // pred_region
          %s160 = sand.u32 %s42, 1
          %s161 = scalar_lea.sflag [#allocation3], %s160
          %s162 = sand.u32 %s42, 1
          %s163 = smul.addr %s162, 16
          %s164 = scalar_lea.vmem [#allocation2], %s163
          %s165 = smul.u32 2, %s26
          %s167 = ssub.s32 256, 256
          %168 = vsyncadd %s161, %s167
          %s169 = smul.addr %s25, 2
          %s170 = sadd.s32 %s165, %s169
          %s171 = smul.addr %s170, 128
          %s172 = scalar_lea.hbm %s0, %s171
          %s173 = sshll.u32 %s164, 4
          %s174 = int_to_ptr.vmem [resolvable:$true] %s173
          %179 = dma.hbm_to_vmem [thread:$0]  %s172, 256, %s174, %s161, 128, 128, 8
        $region20: #{tpu_custom_call.1} parent=15 // pred_fallthru
          _
        // Predicated region
        $region21: #{tpu_custom_call.1} parent=15 // pred_check
          %p180 = pneg %p78
        $region22: #{tpu_custom_call.1} parent=15 // pred_check_branch
          %182 = sbr.rel (%p180) target = $region24
        $region23: #{tpu_custom_call.1} parent=15 // pred_region
          %s183 = sand.u32 %s68, 1
          %s184 = scalar_lea.sflag [#allocation6], %s183
          %s185 = sand.u32 %s68, 1
          %s186 = smul.addr %s185, 16
          %s187 = scalar_lea.vmem [#allocation5], %s186
          %s189 = ssub.s32 256, 256
          %190 = vsyncadd %s184, %s189
          %s191 = smul.addr %s25, 2
          %s192 = smul.addr %s191, 128
          %s193 = scalar_lea.hbm %s1, %s192
          %s194 = sshll.u32 %s187, 4
          %s195 = int_to_ptr.vmem [resolvable:$true] %s194
          %200 = dma.hbm_to_vmem [thread:$0]  %s193, 256, %s195, %s184, 128, 128, 8
        $region24: #{tpu_custom_call.1} parent=15 // pred_fallthru
          _
        // Predicated region
        $region25: #{tpu_custom_call.1} parent=15 // pred_check
          %p201 = pneg %p104
        $region26: #{tpu_custom_call.1} parent=15 // pred_check_branch
          %203 = sbr.rel (%p201) target = $region28
        $region27: #{tpu_custom_call.1} parent=15 // pred_region
          %p204 = scmp.lt.s32.totalorder %s25, 1
          %s205 = scalar_select %p204, %s25, 1
          %s206 = scalar_lea.vmem %s2, %s205
        $region28: #{tpu_custom_call.1} parent=15 // pred_fallthru
          _
      $region16: #{tpu_custom_call.1} parent=5 // pred_fallthru
        _
      %p207 = scmp.le.s32.totalorder 1, %s18
      %p208 = scmp.lt.s32.totalorder %s18, 3
      %p209 = pnand %p207, %p208
      %p210 = pneg %p209
      // Predicated region
      $region29: #{tpu_custom_call.1} parent=5 // pred_check
        _
      $region30: #{tpu_custom_call.1} parent=5 // pred_check_branch
        %212 = sbr.rel (%p209) target = $region32
      $region31: #{tpu_custom_call.1} parent=5 // pred_region
        %s213 = ssub.s32 %s18, 1
        %s214 = sand.u32 %s45, 1
        %s215 = scalar_lea.sflag [#allocation3], %s214
        %s216 = sand.u32 %s45, 1
        %s217 = smul.addr %s216, 16
        %s218 = scalar_lea.vmem [#allocation2], %s217
        // Predicated region
        $region33: #{tpu_custom_call.1} parent=31 // pred_check
          %p219 = pneg %p58
        $region34: #{tpu_custom_call.1} parent=31 // pred_check_branch
          %221 = sbr.rel (%p219) target = $region36
        $region35: #{tpu_custom_call.1} parent=31 // pred_region
          %222 = dma.done %s215, 256
        $region36: #{tpu_custom_call.1} parent=31 // pred_fallthru
          _
        %s223 = sand.u32 %s71, 1
        %s224 = scalar_lea.sflag [#allocation6], %s223
        %s225 = sand.u32 %s71, 1
        %s226 = smul.addr %s225, 16
        %s227 = scalar_lea.vmem [#allocation5], %s226
        // Predicated region
        $region37: #{tpu_custom_call.1} parent=31 // pred_check
          %p228 = pneg %p84
        $region38: #{tpu_custom_call.1} parent=31 // pred_check_branch
          %230 = sbr.rel (%p228) target = $region40
        $region39: #{tpu_custom_call.1} parent=31 // pred_region
          %231 = dma.done %s224, 256
        $region40: #{tpu_custom_call.1} parent=31 // pred_fallthru
          _
        %s232 = sand.u32 %s45, 1
        %s233 = scalar_lea.sflag [#allocation3], %s232
        %s234 = sand.u32 %s45, 1
        %s235 = smul.addr %s234, 16
        %s236 = scalar_lea.vmem [#allocation2], %s235
        %p237 = pneg %p58
        %p238 = pneg %p55
        %s239 = sand.u32 %s71, 1
        %s240 = scalar_lea.sflag [#allocation6], %s239
        %s241 = sand.u32 %s71, 1
        %s242 = smul.addr %s241, 16
        %s243 = scalar_lea.vmem [#allocation5], %s242
        %p244 = pneg %p84
        %p245 = pneg %p81
        %p246 = scmp.lt.s32.totalorder %s27, 1
        %s247 = scalar_select %p246, %s27, 1
        %s248 = scalar_lea.vmem %s2, %s247
        %p249 = pneg %p110
        %p250 = pneg %p107
        %p251 = pneg %p138
        %p252 = pneg %p135
        %s253 = sand.u32 %s125, 1
        %s254 = scalar_lea.sflag [#allocation4], %s253
        %s255 = sand.u32 %s125, 1
        %s256 = smul.addr %s255, 16
        %s257 = scalar_lea.vmem [#allocation7], %s256
        %s258 = smul.u32 2, %s28
        %p259 = scmp.lt.s32.totalorder %s27, 1
        %s260 = scalar_select %p259, %s27, 1
        %s261 = scalar_lea.vmem %s2, %s260
        %s262 = smul.u32 2, %s28
        %v263 = vld [vmem:[%s218] sm:$0xff]
        %v264 = vld [vmem:[%s218 + $0x8] sm:$0xff]
        %v265 = vld [vmem:[%s227] sm:$0xff]
        %v266 = vld [vmem:[%s227 + $0x8] sm:$0xff]
        %vm267 = vcmask 130048
        %v269 = vsel %vm267, %v263, 0
        %v272 = vsel %vm267, %v264, 0
        %v275 = vsel %vm267, %v265, 0
        %v278 = vsel %vm267, %v266, 0
        %280 = vmatprep.subr.mxu0 0.0
        %281 = vmatpush1.xpose.msra.mxu0 %v275
        %282 = vmatprep.subr.mxu0 0.0
        %283 = vmatpush1.xpose.msra.mxu0 %v278
        %284 = vmatprep.subr.mxu0 0.0
        %285 = vmatpush1.xpose.msra.mxu0 0.0
        %286 = vmatprep.subr.mxu0 0.0
        %287 = vmatpush1.xpose.msra.mxu0 0.0
        %288 = vmatprep.subr.mxu0 0.0
        %289 = vmatpush1.xpose.msra.mxu0 0.0
        %290 = vmatprep.subr.mxu0 0.0
        %291 = vmatpush1.xpose.msra.mxu0 0.0
        %292 = vmatprep.subr.mxu0 0.0
        %293 = vmatpush1.xpose.msra.mxu0 0.0
        %294 = vmatprep.subr.mxu0 0.0
        %295 = vmatpush1.xpose.msra.mxu0 0.0
        %296 = vmatprep.subr.mxu0 0.0
        %297 = vmatpush1.xpose.msra.mxu0 0.0
        %298 = vmatprep.subr.mxu0 0.0
        %299 = vmatpush1.xpose.msra.mxu0 0.0
        %300 = vmatprep.subr.mxu0 0.0
        %301 = vmatpush1.xpose.msra.mxu0 0.0
        %302 = vmatprep.subr.mxu0 0.0
        %303 = vmatpush1.xpose.msra.mxu0 0.0
        %304 = vmatprep.subr.mxu0 0.0
        %305 = vmatpush1.xpose.msra.mxu0 0.0
        %306 = vmatprep.subr.mxu0 0.0
        %307 = vmatpush1.xpose.msra.mxu0 0.0
        %308 = vmatprep.subr.mxu0 0.0
        %309 = vmatpush1.xpose.msra.mxu0 0.0
        %310 = vmatprep.subr.mxu0 0.0
        %311 = vmatpush1.xpose.msra.mxu0 0.0
        %312 = vmatprep.subr.mxu0 0.0
        %313 = vmatpush1.xpose.msra.mxu0 0.0
        %314 = vmatprep.subr.mxu0 0.0
        %315 = vmatpush1.xpose.msra.mxu0 0.0
        %316 = vmatprep.subr.mxu0 0.0
        %317 = vmatpush1.xpose.msra.mxu0 0.0
        %318 = vmatprep.subr.mxu0 0.0
        %319 = vmatpush1.xpose.msra.mxu0 0.0
        %320 = vmatprep.subr.mxu0 0.0
        %321 = vmatpush1.xpose.msra.mxu0 0.0
        %322 = vmatprep.subr.mxu0 0.0
        %323 = vmatpush1.xpose.msra.mxu0 0.0
        %324 = vmatprep.subr.mxu0 0.0
        %325 = vmatpush1.xpose.msra.mxu0 0.0
        %326 = vmatprep.subr.mxu0 0.0
        %327 = vmatpush1.xpose.msra.mxu0 0.0
        %328 = vmatprep.subr.mxu0 0.0
        %329 = vmatpush1.xpose.msra.mxu0 0.0
        %330 = vmatprep.subr.mxu0 0.0
        %331 = vmatpush1.xpose.msra.mxu0 0.0
        %332 = vmatprep.subr.mxu0 0.0
        %333 = vmatpush1.xpose.msra.mxu0 0.0
        %334 = vmatprep.subr.mxu0 0.0
        %335 = vmatpush1.xpose.msra.mxu0 0.0
        %336 = vmatprep.subr.mxu0 0.0
        %337 = vmatpush1.xpose.msra.mxu0 0.0
        %338 = vmatprep.subr.mxu0 0.0
        %339 = vmatpush1.xpose.msra.mxu0 0.0
        %340 = vmatprep.subr.mxu0 0.0
        %341 = vmatpush1.xpose.msra.mxu0 0.0
        %342 = vmatprep.subr.mxu0 0.0
        %343 = vmatpush1.xpose.msra.mxu0 0.0
        %344 = vmatprep.mubr.f32.mxu0 0.0
        %345 = vmatmul.mubr.f32.gmra.mrb[0].mxu0 %v269
        %v346 = vpop.f32.mrb[0].mxu0
        %v347 = vadd.f32 0.0, %v346
        %v348 = vpop.f32.mrb[0].mxu0
        %349 = vmatprep.mubr.f32.mxu0 0.0
        %350 = vmatmul.mubr.f32.gmra.mrb[0].mxu0 %v272
        %v351 = vpop.f32.mrb[0].mxu0
        %v352 = vadd.f32 0.0, %v351
        %v353 = vpop.f32.mrb[0].mxu0
        %354 = vdwg.mxu0
        %v355 = vmul.f32 %v263, %v263
        %v356 = vmul.f32 %v264, %v264
        %v357 = vsel %vm267, %v355, 0.0
        %358 = vadd.xlane.f32.xlu0 %v357
        %v359 = vpop.xlane.xlu0 %358
        %v360 = vsel %vm267, %v356, 0.0
        %361 = vadd.xlane.f32.xlu0 %v360
        %v362 = vpop.xlane.xlu0 %361
        %v363 = vmul.f32 %v347, 2.0
        %v364 = vmul.f32 %v352, 2.0
        %v365 = vsub.f32 %v363, %v359
        %v366 = vsub.f32 %v364, %v362
        %v367 = vld [vmem:[%s261] sm:$0x1]
        %v369 = vlaneseq
        %v370 = vshrl.u32 %v369, 7
        %v371 = vsub.s32 0, %v370
        %v372 = vrot.slane %v367, %v371
        %v374 = vsub.f32 %v365, %v372
        %v375 = vsub.f32 %v366, %v372
        %376 = vst.msk [vmem:[%s257] sm:$0xff] %vm267, %v374
        %377 = vst.msk [vmem:[%s257 + $0x8] sm:$0xff] %vm267, %v375
        %s378 = sand.u32 %s125, 1
        %s379 = scalar_lea.sflag [#allocation4], %s378
        %s380 = sand.u32 %s125, 1
        %s381 = smul.addr %s380, 16
        %s382 = scalar_lea.vmem [#allocation7], %s381
        // Predicated region
        $region41: #{tpu_custom_call.1} parent=31 // pred_check
          %p383 = pneg %p135
        $region42: #{tpu_custom_call.1} parent=31 // pred_check_branch
          %385 = sbr.rel (%p383) target = $region44
        $region43: #{tpu_custom_call.1} parent=31 // pred_region
          %s386 = smul.u32 2, %s28
          %s388 = ssub.s32 256, 256
          %389 = vsyncadd %s379, %s388
          %s390 = smul.addr %s27, 2
          %s391 = sadd.s32 %s386, %s390
          %s392 = smul.addr %s391, 128
          %s393 = scalar_lea.hbm %s3, %s392
          %s394 = sshll.u32 %s382, 4
          %s395 = int_to_ptr.vmem [resolvable:$true] %s394
          %400 = dma.vmem_to_hbm [thread:$0]  %s395, 256, %s393, %s379, 128, 128, 8
        $region44: #{tpu_custom_call.1} parent=31 // pred_fallthru
          _
      $region32: #{tpu_custom_call.1} parent=5 // pred_fallthru
        _
      %p401 = scmp.le.s32.totalorder 2, %s18
      // Predicated region
      $region45: #{tpu_custom_call.1} parent=5 // pred_check
        %p402 = pneg %p401
      $region46: #{tpu_custom_call.1} parent=5 // pred_check_branch
        %404 = sbr.rel (%p402) target = $region48
      $region47: #{tpu_custom_call.1} parent=5 // pred_region
        %s405 = ssub.s32 %s18, 2
        // Predicated region
        $region49: #{tpu_custom_call.1} parent=47 // pred_check
          %p406 = pneg %p141
        $region50: #{tpu_custom_call.1} parent=47 // pred_check_branch
          %408 = sbr.rel (%p406) target = $region52
        $region51: #{tpu_custom_call.1} parent=47 // pred_region
          %s409 = sand.u32 %s126, 1
          %s410 = scalar_lea.sflag [#allocation4], %s409
          %s411 = sand.u32 %s126, 1
          %s412 = smul.addr %s411, 16
          %s413 = scalar_lea.vmem [#allocation7], %s412
          %414 = dma.done %s410, 256
        $region52: #{tpu_custom_call.1} parent=47 // pred_fallthru
          _
      $region48: #{tpu_custom_call.1} parent=5 // pred_fallthru
        _
    $region6: #{tpu_custom_call.1} parent=1 // loop_footer
      %s22 = sadd.s32 1, %s18
    $region7: #{tpu_custom_call.1} parent=1 // loop_footer_branch
      %17 = sbr.rel target = $region3
    $region8: #{tpu_custom_call.1} parent=1 // loop_exit
      _
    %415 = vsyncpa [#allocation3], 1
    %s416 = scalar_lea.sflag [#allocation3], 1
    %417 = vsyncpa %s416, 1
    %418 = vsyncpa [#allocation6], 1
    %s419 = scalar_lea.sflag [#allocation6], 1
    %420 = vsyncpa %s419, 1
    %421 = vsyncpa [#allocation4], 1
    %s422 = scalar_lea.sflag [#allocation4], 1
    %423 = vsyncpa %s422, 1

</llo_original>
